<compile_context>
chip_gen: v7x
topology: tpu7x:2x2x1
jax: 0.10.0
libtpu: 0.0.40
codegen_flags: <defaults>
</compile_context>

<pallas_src>
import functools

import jax
import jax.numpy as jnp
from jax.experimental import pallas as pl
from jax.experimental.pallas import tpu as pltpu

_MIB = 1 << 20


def _channel_attention_kernel(x_ref, w1t_ref, w2t_ref, o_ref, acc_sc, *, nb, inv_hw):
    # x_ref  : (nb, C, hw_tile)  batch-tile of flattened-spatial activations
    # w1t_ref: (C, hidden)       first 1x1 conv weight, pre-transposed
    # w2t_ref: (hidden, C)       second 1x1 conv weight, pre-transposed
    # o_ref  : (nb, C)           attention weights (lane-dense)
    # acc_sc : (2*nb, C) f32     rows [:nb] running sum, rows [nb:] running max
    s = pl.program_id(1)
    c = acc_sc.shape[1]

    @pl.when(s == 0)
    def _init():
        acc_sc[pl.ds(0, nb), :] = jnp.zeros((nb, c), jnp.float32)
        acc_sc[pl.ds(nb, nb), :] = jnp.full((nb, c), -jnp.inf, jnp.float32)

    x = x_ref[...].astype(jnp.float32)                        # (nb, C, hw_tile)
    acc_sc[pl.ds(0, nb), :] = acc_sc[pl.ds(0, nb), :] + jnp.sum(x, axis=-1)
    acc_sc[pl.ds(nb, nb), :] = jnp.maximum(acc_sc[pl.ds(nb, nb), :],
                                           jnp.max(x, axis=-1))

    @pl.when(s == pl.num_programs(1) - 1)
    def _finalize():
        # Turn the sum rows into means in-place; acc_sc is then directly the
        # stacked (avg; max) LHS -> shared weight loads, one matmul pair.
        acc_sc[pl.ds(0, nb), :] = acc_sc[pl.ds(0, nb), :] * inv_hw
        p = acc_sc[...]                                       # (2*nb, C)
        h = jnp.maximum(
            jnp.dot(p, w1t_ref[...], preferred_element_type=jnp.float32), 0.0)
        y = jnp.dot(h, w2t_ref[...], preferred_element_type=jnp.float32)
        o_ref[...] = jax.nn.sigmoid(y[:nb] + y[nb:]).astype(o_ref.dtype)


def _hw_info():
    """(per-core VMEM bytes, TensorCores per chip) with conservative fallbacks."""
    vmem = 64 * _MIB          # conservative default (v7x per-TC VMEM)
    cores = 1
    try:
        vmem = int(pltpu.get_tpu_info().vmem_capacity_bytes)
    except Exception:
        pass
    try:
        cores = int(getattr(jax.devices()[0], "num_cores", 1) or 1)
    except Exception:
        pass
    return vmem, cores


def _divisors_desc(n):
    return [d for d in range(n, 0, -1) if n % d == 0]


def _select_tiling(n, c, hw, dtype_bytes, vmem_capacity, cores):
    """Pick (nb, hw_tile).

    * x-tile budget ~ VMEM/5 (headroom for double-buffering + scratch/weights),
      capped at 24 MiB (128-MiB chips) -> ~12 MiB on v7x (64 MiB per TC).
    * Prefer contiguous full-HW slabs: shrink nb (any divisor of N, down to 1)
      before tiling hw.
    * On >=2-TensorCore chips keep the batch grid axis >= 2 (megacore sharding).
    * hw tiling only if a (1, C, HW) slab still exceeds the budget; tiles are
      multiples of 128 dividing HW, largest first (>=512 f32 / >=1024 bf16 floor).
    """
    budget = min(vmem_capacity // 5, 24 * _MIB)
    per_batch = c * hw * dtype_bytes

    nb_max = n
    if cores >= 2 and n >= 2:
        nb_max = max(1, n // 2)            # keep grid[0] >= 2 for both TCs

    nb = 1
    for d in _divisors_desc(n):
        if d <= nb_max and d * per_batch <= budget:
            nb = d
            break

    if nb * per_batch <= budget:
        return nb, hw                      # contiguous-in-HBM full-HW slab

    # Even a single (1, C, HW) slab is too big -> tile the spatial axis.
    if hw % 128 != 0:
        return 1, hw                       # cannot tile legally; keep full HW
    min_tile = 512 if dtype_bytes >= 4 else 1024
    max_tile = (budget // (c * dtype_bytes)) // 128 * 128
    max_tile = max(max_tile, min_tile)
    max_tile = min(max_tile, hw)
    for t in range(max_tile, 127, -128):
        if hw % t == 0:
            return 1, t
    return 1, hw


def _vmem_needed(x_tile_bytes, nb, c, hidden, buffer_count):
    scratch = 2 * nb * c * 4
    weights = 2 * c * hidden * 4           # w1t + w2t, f32
    out = nb * c * 4
    return buffer_count * x_tile_bytes + scratch + 2 * (weights + out) + 2 * _MIB


def channel_attention(x, w1, w2, *, nb=None, hw_tile=None, vmem_limit_bytes=None):
    """x: (N, C, H, W) f32/bf16; w1: (C//r, C); w2: (C, C//r). Returns (N, C, 1, 1) f32."""
    N, C, H, W = x.shape
    hidden = w1.shape[0]
    hw = H * W
    xr = x.reshape(N, C, hw)
    # Pre-transpose the 1x1 conv weights outside the kernel (free in XLA) so the
    # kernel's matmuls are plain row-major dots.
    w1t = jnp.transpose(w1).astype(jnp.float32)   # (C, hidden)
    w2t = jnp.transpose(w2).astype(jnp.float32)   # (hidden, C)

    dtype_bytes = jnp.dtype(xr.dtype).itemsize
    vmem_capacity, cores = _hw_info()

    if nb is None and hw_tile is None:
        nb, hw_tile = _select_tiling(N, C, hw, dtype_bytes, vmem_capacity, cores)
    elif nb is None:
        nb, _ = _select_tiling(N, C, hw, dtype_bytes, vmem_capacity, cores)
    elif hw_tile is None:
        hw_tile = hw
    assert N % nb == 0, "nb must divide N"
    assert hw % hw_tile == 0, "hw_tile must divide H*W"

    grid = (N // nb, hw // hw_tile)
    n_hw_steps = grid[1]
    x_tile_bytes = nb * C * hw_tile * dtype_bytes
    cap = (3 * vmem_capacity) // 4          # ~96 MiB on 128-MiB chips, ~48 MiB on v7x

    # Deeper input pipelining only on v7x-like chips with many tiny reduction steps.
    buffer_count = 2
    if (cores >= 2 or vmem_capacity <= 64 * _MIB) and n_hw_steps >= 8:
        if _vmem_needed(x_tile_bytes, nb, C, hidden, 3) <= cap:
            buffer_count = 3

    if vmem_limit_bytes is None:
        needed = _vmem_needed(x_tile_bytes, nb, C, hidden, buffer_count)
        vmem_limit_bytes = int(min(cap, max(needed, 32 * _MIB)))

    if buffer_count == 3:
        x_spec = pl.BlockSpec((nb, C, hw_tile), lambda b, s: (b, 0, s),
                              pipeline_mode=pl.Buffered(3))
    else:
        x_spec = pl.BlockSpec((nb, C, hw_tile), lambda b, s: (b, 0, s))

    kernel = functools.partial(_channel_attention_kernel, nb=nb, inv_hw=1.0 / hw)

    out = pl.pallas_call(
        kernel,
        out_shape=jax.ShapeDtypeStruct((N, C), jnp.float32),
        grid_spec=pltpu.PrefetchScalarGridSpec(
            num_scalar_prefetch=0,
            grid=grid,
            in_specs=[
                x_spec,
                pl.BlockSpec((C, hidden), lambda b, s: (0, 0)),
                pl.BlockSpec((hidden, C), lambda b, s: (0, 0)),
            ],
            # Lane-dense (nb, C) output block; same block across the hw axis
            # (reduction), so it stays resident and is written once at the end.
            out_specs=pl.BlockSpec((nb, C), lambda b, s: (b, 0)),
            scratch_shapes=[
                pltpu.VMEM((2 * nb, C), jnp.float32),   # [sum ; max] accumulator
            ],
        ),
        compiler_params=pltpu.CompilerParams(
            dimension_semantics=("parallel", "arbitrary"),
            vmem_limit_bytes=vmem_limit_bytes,
        ),
    )(xr, w1t, w2t)
    return out.reshape(N, C, 1, 1)


def _reference(x, w1, w2):
    xf = x.astype(jnp.float32)
    avg = jnp.mean(xf, axis=(2, 3))                # (N, C)
    mx = jnp.max(xf, axis=(2, 3))                  # (N, C)

    def fc(v):
        return jnp.maximum(v @ w1.T, 0.0) @ w2.T

    return jax.nn.sigmoid(fc(avg) + fc(mx))[:, :, None, None]


if __name__ == "__main__":
    # Small shapes consistent with the module: in_channels=32, reduction_ratio=8 -> hidden=4
    N, C, H, W = 2, 32, 16, 16
    reduction_ratio = 8
    hidden = C // reduction_ratio

    key = jax.random.PRNGKey(0)
    kx, k1, k2 = jax.random.split(key, 3)

    x = jax.random.normal(kx, (N, C, H, W), dtype=jnp.float32)
    # Deterministic "kaiming-like" init for the two 1x1 convs (no bias).
    w1 = jax.random.normal(k1, (hidden, C), dtype=jnp.float32) * (2.0 / C) ** 0.5
    w2 = jax.random.normal(k2, (C, hidden), dtype=jnp.float32) * (2.0 / hidden) ** 0.5

    y_ref = _reference(x, w1, w2)

    # 1) Default path: auto tiling (contiguous full-HW slab, single reduction step
    #    on 1-TC chips; batch split across cores on multi-TC chips).
    y = channel_attention(x, w1, w2)
    jax.block_until_ready(y)
    assert y.shape == (N, C, 1, 1)
    assert jnp.allclose(y, y_ref, atol=1e-5, rtol=1e-5), "mismatch vs JAX reference"

    # 2) Explicit HW tiling (exercises the running-sum / running-max accumulation
    #    path used when a full-HW slab would exceed the VMEM tile budget).
    y_tiled = channel_attention(x, w1, w2, hw_tile=128)
    jax.block_until_ready(y_tiled)
    assert jnp.allclose(y_tiled, y_ref, atol=1e-5, rtol=1e-5), "mismatch (hw-tiled) vs reference"

    print("KERNEL_OK")
</pallas_src>

<mosaic_0001>
module attributes {stable_mosaic.version = 11 : i64} {
  func.func @_channel_attention_kernel(%arg0: i32, %arg1: i32, %arg2: memref<2x32x256xf32, #tpu.memory_space<vmem>>, %arg3: memref<32x4xf32, #tpu.memory_space<vmem>>, %arg4: memref<4x32xf32, #tpu.memory_space<vmem>>, %arg5: memref<2x32xf32, #tpu.memory_space<vmem>>, %arg6: memref<4x32xf32, #tpu.memory_space<vmem>>) attributes {dimension_semantics = [#tpu.dimension_semantics<parallel>, #tpu.dimension_semantics<arbitrary>], iteration_bounds = array<i64: 1, 1>, scalar_prefetch = 0 : i64, scratch_operands = 1 : i64, tpu.core_type = #tpu.core_type<tc>, window_params = [{transform_indices = @transform_0, window_bounds = array<i64: 2, 32, 256>}, {pipeline_mode = #tpu.pipeline_mode<synchronous>, transform_indices = @transform_1, window_bounds = array<i64: 32, 4>}, {pipeline_mode = #tpu.pipeline_mode<synchronous>, transform_indices = @transform_2, window_bounds = array<i64: 4, 32>}, {transform_indices = @transform_3, window_bounds = array<i64: 2, 32>}]} {
    %c0_i32 = arith.constant 0 : i32
    %0 = arith.cmpi eq, %arg1, %c0_i32 : i32
    %1 = arith.extui %0 : i1 to i32
    %c0_i32_0 = arith.constant 0 : i32
    %2 = arith.cmpi ne, %1, %c0_i32_0 : i32
    scf.if %2 {
      %cst_13 = arith.constant 0.000000e+00 : f32
      %15 = vector.broadcast %cst_13 : f32 to vector<2x32xf32>
      %c0_14 = arith.constant 0 : index
      %c0_15 = arith.constant 0 : index
      %16 = vector.load %arg6[%c0_14, %c0_15] : memref<4x32xf32, #tpu.memory_space<vmem>>, vector<2x32xf32>
      tpu.vector_store %arg6[%c0_14, %c0_15], %15 {strides = array<i32>} : memref<4x32xf32, #tpu.memory_space<vmem>>, vector<2x32xf32>,
      %cst_16 = arith.constant 0xFF800000 : f32
      %17 = vector.broadcast %cst_16 : f32 to vector<2x32xf32>
      %c2_17 = arith.constant 2 : index
      %c0_18 = arith.constant 0 : index
      %18 = vector.load %arg6[%c2_17, %c0_18] : memref<4x32xf32, #tpu.memory_space<vmem>>, vector<2x32xf32>
      tpu.vector_store %arg6[%c2_17, %c0_18], %17 {strides = array<i32>} : memref<4x32xf32, #tpu.memory_space<vmem>>, vector<2x32xf32>,
    } else {
    }
    %c0 = arith.constant 0 : index
    %c0_1 = arith.constant 0 : index
    %c0_2 = arith.constant 0 : index
    %3 = vector.load %arg2[%c0, %c0_1, %c0_2] : memref<2x32x256xf32, #tpu.memory_space<vmem>>, vector<2x32x256xf32>
    %c0_3 = arith.constant 0 : index
    %c0_4 = arith.constant 0 : index
    %4 = vector.load %arg6[%c0_3, %c0_4] : memref<4x32xf32, #tpu.memory_space<vmem>>, vector<2x32xf32>
    %cst = arith.constant dense<0.000000e+00> : vector<2x32xf32>
    %5 = vector.multi_reduction <add>, %3, %cst [2] : vector<2x32x256xf32> to vector<2x32xf32>
    %6 = arith.addf %4, %5 : vector<2x32xf32>
    %c0_5 = arith.constant 0 : index
    %c0_6 = arith.constant 0 : index
    %7 = vector.load %arg6[%c0_5, %c0_6] : memref<4x32xf32, #tpu.memory_space<vmem>>, vector<2x32xf32>
    tpu.vector_store %arg6[%c0_5, %c0_6], %6 {strides = array<i32>} : memref<4x32xf32, #tpu.memory_space<vmem>>, vector<2x32xf32>,
    %c2 = arith.constant 2 : index
    %c0_7 = arith.constant 0 : index
    %8 = vector.load %arg6[%c2, %c0_7] : memref<4x32xf32, #tpu.memory_space<vmem>>, vector<2x32xf32>
    %cst_8 = arith.constant dense<0xFF800000> : vector<2x32xf32>
    %9 = vector.multi_reduction <maximumf>, %3, %cst_8 [2] : vector<2x32x256xf32> to vector<2x32xf32>
    %10 = arith.maximumf %8, %9 : vector<2x32xf32>
    %c2_9 = arith.constant 2 : index
    %c0_10 = arith.constant 0 : index
    %11 = vector.load %arg6[%c2_9, %c0_10] : memref<4x32xf32, #tpu.memory_space<vmem>>, vector<2x32xf32>
    tpu.vector_store %arg6[%c2_9, %c0_10], %10 {strides = array<i32>} : memref<4x32xf32, #tpu.memory_space<vmem>>, vector<2x32xf32>,
    %c0_i32_11 = arith.constant 0 : i32
    %12 = arith.cmpi eq, %arg1, %c0_i32_11 : i32
    %13 = arith.extui %12 : i1 to i32
    %c0_i32_12 = arith.constant 0 : i32
    %14 = arith.cmpi ne, %13, %c0_i32_12 : i32
    scf.if %14 {
      %c0_13 = arith.constant 0 : index
      %c0_14 = arith.constant 0 : index
      %15 = vector.load %arg6[%c0_13, %c0_14] : memref<4x32xf32, #tpu.memory_space<vmem>>, vector<2x32xf32>
      %cst_15 = arith.constant 3.906250e-03 : f32
      %16 = vector.broadcast %cst_15 : f32 to vector<2x32xf32>
      %17 = arith.mulf %15, %16 : vector<2x32xf32>
      %c0_16 = arith.constant 0 : index
      %c0_17 = arith.constant 0 : index
      %18 = vector.load %arg6[%c0_16, %c0_17] : memref<4x32xf32, #tpu.memory_space<vmem>>, vector<2x32xf32>
      tpu.vector_store %arg6[%c0_16, %c0_17], %17 {strides = array<i32>} : memref<4x32xf32, #tpu.memory_space<vmem>>, vector<2x32xf32>,
      %c0_18 = arith.constant 0 : index
      %c0_19 = arith.constant 0 : index
      %19 = vector.load %arg6[%c0_18, %c0_19] : memref<4x32xf32, #tpu.memory_space<vmem>>, vector<4x32xf32>
      %c0_20 = arith.constant 0 : index
      %c0_21 = arith.constant 0 : index
      %20 = vector.load %arg3[%c0_20, %c0_21] : memref<32x4xf32, #tpu.memory_space<vmem>>, vector<32x4xf32>
      %cst_22 = arith.constant dense<0.000000e+00> : vector<4x4xf32>
      %21 = tpu.matmul %19, %20, %cst_22 {dimension_numbers = #tpu.dot_dimension_numbers<[1], [0], [0], [1], [0, 0, 1, 1], [], []>} : vector<4x32xf32>, vector<32x4xf32>, vector<4x4xf32> -> vector<4x4xf32>
      %cst_23 = arith.constant 0.000000e+00 : f32
      %22 = vector.broadcast %cst_23 : f32 to vector<4x4xf32>
      %23 = arith.maximumf %21, %22 : vector<4x4xf32>
      %c0_24 = arith.constant 0 : index
      %c0_25 = arith.constant 0 : index
      %24 = vector.load %arg4[%c0_24, %c0_25] : memref<4x32xf32, #tpu.memory_space<vmem>>, vector<4x32xf32>
      %cst_26 = arith.constant dense<0.000000e+00> : vector<4x32xf32>
      %25 = tpu.matmul %23, %24, %cst_26 {dimension_numbers = #tpu.dot_dimension_numbers<[1], [0], [0], [1], [0, 0, 1, 1], [], []>} : vector<4x4xf32>, vector<4x32xf32>, vector<4x32xf32> -> vector<4x32xf32>
      %26 = vector.extract_strided_slice %25 {offsets = [0, 0], sizes = [2, 32], strides = [1, 1]} : vector<4x32xf32> to vector<2x32xf32>
      %27 = vector.extract_strided_slice %25 {offsets = [2, 0], sizes = [2, 32], strides = [1, 1]} : vector<4x32xf32> to vector<2x32xf32>
      %28 = arith.addf %26, %27 : vector<2x32xf32>
      %29 = arith.negf %28 : vector<2x32xf32>
      %30 = math.exp %29 : vector<2x32xf32>
      %cst_27 = arith.constant 1.000000e+00 : f32
      %31 = vector.broadcast %cst_27 : f32 to vector<2x32xf32>
      %32 = arith.addf %31, %30 : vector<2x32xf32>
      %33 = arith.divf %31, %32 : vector<2x32xf32>
      %c0_28 = arith.constant 0 : index
      %c0_29 = arith.constant 0 : index
      %34 = vector.load %arg5[%c0_28, %c0_29] : memref<2x32xf32, #tpu.memory_space<vmem>>, vector<2x32xf32>
      tpu.vector_store %arg5[%c0_28, %c0_29], %33 {strides = array<i32>} : memref<2x32xf32, #tpu.memory_space<vmem>>, vector<2x32xf32>,
    } else {
    }
    return
  }
  func.func @transform_0(%arg0: i32, %arg1: i32) -> (i32, i32, i32) {
    %c0_i32 = arith.constant 0 : i32
    %c0_i32_0 = arith.constant 0 : i32
    return %arg0, %c0_i32, %arg1 : i32, i32, i32
  }
  func.func @transform_1(%arg0: i32, %arg1: i32) -> (i32, i32) {
    %c0_i32 = arith.constant 0 : i32
    %c0_i32_0 = arith.constant 0 : i32
    %c0_i32_1 = arith.constant 0 : i32
    return %c0_i32, %c0_i32_0 : i32, i32
  }
  func.func @transform_2(%arg0: i32, %arg1: i32) -> (i32, i32) {
    %c0_i32 = arith.constant 0 : i32
    %c0_i32_0 = arith.constant 0 : i32
    %c0_i32_1 = arith.constant 0 : i32
    return %c0_i32, %c0_i32_0 : i32, i32
  }
  func.func @transform_3(%arg0: i32, %arg1: i32) -> (i32, i32) {
    %c0_i32 = arith.constant 0 : i32
    %c0_i32_0 = arith.constant 0 : i32
    return %arg0, %c0_i32 : i32, i32
  }
}

</mosaic_0001>

<llo_original>
// kernel: tpu_custom_call.1
$region0: #{tpu_custom_call.1}
  #allocation0 [shape = 'u32[]', space=smem, size = 0x4, offset = 0x4, fixed_abs, tag = 'smem constant byte address 0x4 - core index']
  #allocation1 [shape = 'u32[144,128]{1,0:T(1,128)}', space=vmem, size = 0x12000, scoped, tag = 'internal scratch']
  #allocation2 [shape = 'f32[4,32]{1,0:T(4,128)}', space=vmem, size = 0x800, scoped, tag = 'scratch operand']
  %s0 = inlined_call_operand.hbm [shape: f32[2,32,256], index: 0, kind: input, shape index: {}]
  %s1 = inlined_call_operand.vmem [shape: f32[32,4], index: 1, kind: input, shape index: {}]
  %s2 = inlined_call_operand.vmem [shape: f32[4,32], index: 2, kind: input, shape index: {}]
  %s3 = inlined_call_operand.hbm [shape: f32[2,32], index: 3, kind: output, shape index: {}]
  %s4 = sld [smem:[#allocation0]]
  $region34: #{tpu_custom_call.1} parent=0
    _
  %s6 = ssub.s32 1, %s4
  %s7 = scalar_select 0, %s6, %s4
  $region1: #{tpu_custom_call.1} parent=0
    #allocation3 [shape = 'u8[65536]{0}', space=vmem, size = 0x10000, scoped, tag = 'input window, operand 0, single buffered']
    #allocation4 [shape = 's32[1]{0}', space=sflag, size = 0x4, scoped, tag = 'scoped memory for tpu_custom_call.1']
    #allocation5 [shape = 's32[1]{0}', space=sflag, size = 0x4, scoped, tag = 'scoped memory for tpu_custom_call.1']
    #allocation6 [shape = 'u8[1024]{0}', space=vmem, size = 0x400, scoped, tag = 'output window, operand 0, single buffered']
    %8 = vsyncpa [#allocation4], 0
    %9 = vsyncpa [#allocation5], 0
    // Predicated region
    $region2: #{tpu_custom_call.1} parent=1 // pred_check
      _
    $region3: #{tpu_custom_call.1} parent=1 // pred_check_branch
      %11 = sbr.rel (0) target = $region5
    $region4: #{tpu_custom_call.1} parent=1 // pred_region
      %s13 = ssub.s32 2048, 2048
      %14 = vsyncadd [#allocation4], %s13
      %s15 = sshll.u32 [#allocation3], 4
      %s16 = int_to_ptr.vmem [resolvable:$true] %s15
      %21 = dma.hbm_to_vmem [thread:$0]  %s0, 2048, %s16, [#allocation4], 256, 256, 16
    $region5: #{tpu_custom_call.1} parent=1 // pred_fallthru
      _
    // Predicated region
    $region6: #{tpu_custom_call.1} parent=1 // pred_check
      _
    $region7: #{tpu_custom_call.1} parent=1 // pred_check_branch
      %23 = sbr.rel (0) target = $region9
    $region8: #{tpu_custom_call.1} parent=1 // pred_region
      _
    $region9: #{tpu_custom_call.1} parent=1 // pred_fallthru
      _
    // Predicated region
    $region10: #{tpu_custom_call.1} parent=1 // pred_check
      _
    $region11: #{tpu_custom_call.1} parent=1 // pred_check_branch
      %25 = sbr.rel (0) target = $region13
    $region12: #{tpu_custom_call.1} parent=1 // pred_region
      _
    $region13: #{tpu_custom_call.1} parent=1 // pred_fallthru
      _
    // Predicated region
    $region14: #{tpu_custom_call.1} parent=1 // pred_check
      _
    $region15: #{tpu_custom_call.1} parent=1 // pred_check_branch
      %27 = sbr.rel (0) target = $region17
    $region16: #{tpu_custom_call.1} parent=1 // pred_region
      %28 = dma.done [#allocation4], 2048
    $region17: #{tpu_custom_call.1} parent=1 // pred_fallthru
      _
    %p29 = scmp.eq.s32.totalorder 0, 0
    // Predicated region
    $region18: #{tpu_custom_call.1} parent=1 // pred_check
      %p30 = pneg %p29
    $region19: #{tpu_custom_call.1} parent=1 // pred_check_branch
      %32 = sbr.rel (%p30) target = $region21
    $region20: #{tpu_custom_call.1} parent=1 // pred_region
      %vm33 = vcmask 254976
      %34 = vst.msk [vmem:[#allocation2] sm:$0x3] %vm33, 0.0
      %35 = vst.msk [vmem:[#allocation2 + $0x2] sm:$0x3] %vm33, -inf
    $region21: #{tpu_custom_call.1} parent=1 // pred_fallthru
      _
    %v36 = vld [vmem:[#allocation3] sm:$0xff]
    %v37 = vld [vmem:[#allocation3 + $0x8] sm:$0xff]
    %v38 = vld [vmem:[#allocation3 + $0x10] sm:$0xff]
    %v39 = vld [vmem:[#allocation3 + $0x18] sm:$0xff]
    %v40 = vld [vmem:[#allocation3 + $0x20] sm:$0xff]
    %v41 = vld [vmem:[#allocation3 + $0x28] sm:$0xff]
    %v42 = vld [vmem:[#allocation3 + $0x30] sm:$0xff]
    %v43 = vld [vmem:[#allocation3 + $0x38] sm:$0xff]
    %v44 = vld [vmem:[#allocation3 + $0x40] sm:$0xff]
    %v45 = vld [vmem:[#allocation3 + $0x48] sm:$0xff]
    %v46 = vld [vmem:[#allocation3 + $0x50] sm:$0xff]
    %v47 = vld [vmem:[#allocation3 + $0x58] sm:$0xff]
    %v48 = vld [vmem:[#allocation3 + $0x60] sm:$0xff]
    %v49 = vld [vmem:[#allocation3 + $0x68] sm:$0xff]
    %v50 = vld [vmem:[#allocation3 + $0x70] sm:$0xff]
    %v51 = vld [vmem:[#allocation3 + $0x78] sm:$0xff]
    %v52 = vld [vmem:[#allocation2] sm:$0x3]
    %v53 = vadd.f32 %v36, %v37
    %54 = vadd.xlane.f32.xlu0 %v53
    %v55 = vpop.xlane.xlu0 %54
    %v56 = vadd.f32 %v38, %v39
    %57 = vadd.xlane.f32.xlu0 %v56
    %v58 = vpop.xlane.xlu0 %57
    %v59 = vadd.f32 %v40, %v41
    %60 = vadd.xlane.f32.xlu0 %v59
    %v61 = vpop.xlane.xlu0 %60
    %v62 = vadd.f32 %v42, %v43
    %63 = vadd.xlane.f32.xlu0 %v62
    %v64 = vpop.xlane.xlu0 %63
    %v65 = vadd.f32 %v44, %v45
    %66 = vadd.xlane.f32.xlu0 %v65
    %v67 = vpop.xlane.xlu0 %66
    %v68 = vadd.f32 %v46, %v47
    %69 = vadd.xlane.f32.xlu0 %v68
    %v70 = vpop.xlane.xlu0 %69
    %v71 = vadd.f32 %v48, %v49
    %72 = vadd.xlane.f32.xlu0 %v71
    %v73 = vpop.xlane.xlu0 %72
    %v74 = vadd.f32 %v50, %v51
    %75 = vadd.xlane.f32.xlu0 %v74
    %v76 = vpop.xlane.xlu0 %75
    %v85 = vlaneseq
    %v86 = vand.u32 %v85, 127
    %v87 = vlaneseq
    %v88 = vshrl.u32 %v87, 7
    %v89 = vsub.s32 %v86, %v88
    %v90 = vrot.slane %v55, %v89
    %v91 = vadd.s32 %v86, 4294967288
    %v92 = vlaneseq
    %v93 = vshrl.u32 %v92, 7
    %v94 = vsub.s32 %v91, %v93
    %v95 = vrot.slane %v58, %v94
    %vm96 = vcmask 130112
    %v97 = vsel %vm96, %v95, %v90
    %v98 = vadd.s32 %v86, 4294967280
    %v99 = vlaneseq
    %v100 = vshrl.u32 %v99, 7
    %v101 = vsub.s32 %v98, %v100
    %v102 = vrot.slane %v61, %v101
    %vm103 = vcmask 195712
    %v104 = vsel %vm103, %v102, %v97
    %v105 = vadd.s32 %v86, 4294967272
    %v106 = vlaneseq
    %v107 = vshrl.u32 %v106, 7
    %v108 = vsub.s32 %v105, %v107
    %v109 = vrot.slane %v64, %v108
    %vm110 = vcmask 261312
    %v111 = vsel %vm110, %v109, %v104
    %v112 = vlaneseq
    %v113 = vshrl.u32 %v112, 7
    %v114 = vsub.s32 %v86, %v113
    %v115 = vrot.slane %v67, %v114
    %v116 = vlaneseq
    %v117 = vshrl.u32 %v116, 7
    %v118 = vsub.s32 %v91, %v117
    %v119 = vrot.slane %v70, %v118
    %v120 = vsel %vm96, %v119, %v115
    %v121 = vlaneseq
    %v122 = vshrl.u32 %v121, 7
    %v123 = vsub.s32 %v98, %v122
    %v124 = vrot.slane %v73, %v123
    %v125 = vsel %vm103, %v124, %v120
    %v126 = vlaneseq
    %v127 = vshrl.u32 %v126, 7
    %v128 = vsub.s32 %v105, %v127
    %v129 = vrot.slane %v76, %v128
    %v130 = vsel %vm110, %v129, %v125
    %vm131 = vcmask 1041409
    %v132 = vsel %vm131, %v130, %v111
    %v134 = vadd.f32 %v52, %v132
    %vm135 = vcmask 254976
    %136 = vst.msk [vmem:[#allocation2] sm:$0x3] %vm135, %v134
    %v137 = vld [vmem:[#allocation2 + $0x2] sm:$0x3]
    %v138 = vmax.f32 %v36, %v37
    %139 = vmax.xlane.f32.xlu0 %v138
    %v140 = vpop.xlane.xlu0 %139
    %v141 = vmax.f32 %v38, %v39
    %142 = vmax.xlane.f32.xlu0 %v141
    %v143 = vpop.xlane.xlu0 %142
    %v144 = vmax.f32 %v40, %v41
    %145 = vmax.xlane.f32.xlu0 %v144
    %v146 = vpop.xlane.xlu0 %145
    %v147 = vmax.f32 %v42, %v43
    %148 = vmax.xlane.f32.xlu0 %v147
    %v149 = vpop.xlane.xlu0 %148
    %v150 = vmax.f32 %v44, %v45
    %151 = vmax.xlane.f32.xlu0 %v150
    %v152 = vpop.xlane.xlu0 %151
    %v153 = vmax.f32 %v46, %v47
    %154 = vmax.xlane.f32.xlu0 %v153
    %v155 = vpop.xlane.xlu0 %154
    %v156 = vmax.f32 %v48, %v49
    %157 = vmax.xlane.f32.xlu0 %v156
    %v158 = vpop.xlane.xlu0 %157
    %v159 = vmax.f32 %v50, %v51
    %160 = vmax.xlane.f32.xlu0 %v159
    %v161 = vpop.xlane.xlu0 %160
    %v170 = vlaneseq
    %v171 = vshrl.u32 %v170, 7
    %v172 = vsub.s32 %v86, %v171
    %v173 = vrot.slane %v140, %v172
    %v174 = vlaneseq
    %v175 = vshrl.u32 %v174, 7
    %v176 = vsub.s32 %v91, %v175
    %v177 = vrot.slane %v143, %v176
    %v178 = vsel %vm96, %v177, %v173
    %v179 = vlaneseq
    %v180 = vshrl.u32 %v179, 7
    %v181 = vsub.s32 %v98, %v180
    %v182 = vrot.slane %v146, %v181
    %v183 = vsel %vm103, %v182, %v178
    %v184 = vlaneseq
    %v185 = vshrl.u32 %v184, 7
    %v186 = vsub.s32 %v105, %v185
    %v187 = vrot.slane %v149, %v186
    %v188 = vsel %vm110, %v187, %v183
    %v189 = vlaneseq
    %v190 = vshrl.u32 %v189, 7
    %v191 = vsub.s32 %v86, %v190
    %v192 = vrot.slane %v152, %v191
    %v193 = vlaneseq
    %v194 = vshrl.u32 %v193, 7
    %v195 = vsub.s32 %v91, %v194
    %v196 = vrot.slane %v155, %v195
    %v197 = vsel %vm96, %v196, %v192
    %v198 = vlaneseq
    %v199 = vshrl.u32 %v198, 7
    %v200 = vsub.s32 %v98, %v199
    %v201 = vrot.slane %v158, %v200
    %v202 = vsel %vm103, %v201, %v197
    %v203 = vlaneseq
    %v204 = vshrl.u32 %v203, 7
    %v205 = vsub.s32 %v105, %v204
    %v206 = vrot.slane %v161, %v205
    %v207 = vsel %vm110, %v206, %v202
    %v208 = vsel %vm131, %v207, %v188
    %v210 = vmax.f32 %v137, %v208
    %211 = vst.msk [vmem:[#allocation2 + $0x2] sm:$0x3] %vm135, %v210
    // Predicated region
    $region22: #{tpu_custom_call.1} parent=1 // pred_check
      %p212 = pneg %p29
    $region23: #{tpu_custom_call.1} parent=1 // pred_check_branch
      %214 = sbr.rel (%p212) target = $region25
    $region24: #{tpu_custom_call.1} parent=1 // pred_region
      %v215 = vld [vmem:[#allocation2] sm:$0x3]
      %v216 = vmul.f32 %v215, 0.00390625
      %217 = vst.msk [vmem:[#allocation2] sm:$0x3] %vm135, %v216
      %v218 = vld [vmem:[#allocation2] sm:$0xf]
      %v219 = vld [vmem:[%s1] sm:$0xff]
      %v220 = vld [vmem:[%s1 + $0x8] sm:$0xff]
      %v221 = vld [vmem:[%s1 + $0x10] sm:$0xff]
      %v222 = vld [vmem:[%s1 + $0x18] sm:$0xff]
      %vm223 = vcmask 261120
      %v225 = vsel %vm223, %v218, 0
      %227 = vmatprep.subr.mxu0 0.0
      %228 = vmatpush1.msra.mxu0 %v219
      %229 = vmatprep.subr.mxu0 0.0
      %230 = vmatpush1.msra.mxu0 %v220
      %231 = vmatprep.subr.mxu0 0.0
      %232 = vmatpush1.msra.mxu0 %v221
      %233 = vmatprep.subr.mxu0 0.0
      %234 = vmatpush1.msra.mxu0 %v222
      %235 = vmatprep.subr.mxu0 0.0
      %236 = vmatpush1.msra.mxu0 0.0
      %237 = vmatprep.subr.mxu0 0.0
      %238 = vmatpush1.msra.mxu0 0.0
      %239 = vmatprep.subr.mxu0 0.0
      %240 = vmatpush1.msra.mxu0 0.0
      %241 = vmatprep.subr.mxu0 0.0
      %242 = vmatpush1.msra.mxu0 0.0
      %243 = vmatprep.subr.mxu0 0.0
      %244 = vmatpush1.msra.mxu0 0.0
      %245 = vmatprep.subr.mxu0 0.0
      %246 = vmatpush1.msra.mxu0 0.0
      %247 = vmatprep.subr.mxu0 0.0
      %248 = vmatpush1.msra.mxu0 0.0
      %249 = vmatprep.subr.mxu0 0.0
      %250 = vmatpush1.msra.mxu0 0.0
      %251 = vmatprep.subr.mxu0 0.0
      %252 = vmatpush1.msra.mxu0 0.0
      %253 = vmatprep.subr.mxu0 0.0
      %254 = vmatpush1.msra.mxu0 0.0
      %255 = vmatprep.subr.mxu0 0.0
      %256 = vmatpush1.msra.mxu0 0.0
      %257 = vmatprep.subr.mxu0 0.0
      %258 = vmatpush1.msra.mxu0 0.0
      %259 = vmatprep.subr.mxu0 0.0
      %260 = vmatpush1.msra.mxu0 0.0
      %261 = vmatprep.subr.mxu0 0.0
      %262 = vmatpush1.msra.mxu0 0.0
      %263 = vmatprep.subr.mxu0 0.0
      %264 = vmatpush1.msra.mxu0 0.0
      %265 = vmatprep.subr.mxu0 0.0
      %266 = vmatpush1.msra.mxu0 0.0
      %267 = vmatprep.subr.mxu0 0.0
      %268 = vmatpush1.msra.mxu0 0.0
      %269 = vmatprep.subr.mxu0 0.0
      %270 = vmatpush1.msra.mxu0 0.0
      %271 = vmatprep.subr.mxu0 0.0
      %272 = vmatpush1.msra.mxu0 0.0
      %273 = vmatprep.subr.mxu0 0.0
      %274 = vmatpush1.msra.mxu0 0.0
      %275 = vmatprep.subr.mxu0 0.0
      %276 = vmatpush1.msra.mxu0 0.0
      %277 = vmatprep.subr.mxu0 0.0
      %278 = vmatpush1.msra.mxu0 0.0
      %279 = vmatprep.subr.mxu0 0.0
      %280 = vmatpush1.msra.mxu0 0.0
      %281 = vmatprep.subr.mxu0 0.0
      %282 = vmatpush1.msra.mxu0 0.0
      %283 = vmatprep.subr.mxu0 0.0
      %284 = vmatpush1.msra.mxu0 0.0
      %285 = vmatprep.subr.mxu0 0.0
      %286 = vmatpush1.msra.mxu0 0.0
      %287 = vmatprep.subr.mxu0 0.0
      %288 = vmatpush1.msra.mxu0 0.0
      %289 = vmatprep.subr.mxu0 0.0
      %290 = vmatpush1.msra.mxu0 0.0
      %291 = vmatprep.mubr.f32.mxu0 0.0
      %292 = vmatmul.mubr.f32.gmra.mrb[0].mxu0 %v225
      %v293 = vpop.f32.mrb[0].mxu0
      %v294 = vadd.f32 0.0, %v293
      %v295 = vpop.f32.mrb[0].mxu0
      %296 = vdwg.mxu0
      %v297 = vmax.f32 %v294, 0.0
      %v298 = vld [vmem:[%s2] sm:$0xf]
      %vm299 = vcmask 31744
      %v301 = vsel %vm299, %v297, 0
      %vm303 = vcmask 1043456
      %v305 = vsel %vm303, %v298, 0
      %307 = vmatprep.subr.mxu0 0.0
      %308 = vmatpush1.msra.mxu0 %v305
      %309 = vmatprep.subr.mxu0 0.0
      %310 = vmatpush1.msra.mxu0 0.0
      %311 = vmatprep.subr.mxu0 0.0
      %312 = vmatpush1.msra.mxu0 0.0
      %313 = vmatprep.subr.mxu0 0.0
      %314 = vmatpush1.msra.mxu0 0.0
      %315 = vmatprep.subr.mxu0 0.0
      %316 = vmatpush1.msra.mxu0 0.0
      %317 = vmatprep.subr.mxu0 0.0
      %318 = vmatpush1.msra.mxu0 0.0
      %319 = vmatprep.subr.mxu0 0.0
      %320 = vmatpush1.msra.mxu0 0.0
      %321 = vmatprep.subr.mxu0 0.0
      %322 = vmatpush1.msra.mxu0 0.0
      %323 = vmatprep.subr.mxu0 0.0
      %324 = vmatpush1.msra.mxu0 0.0
      %325 = vmatprep.subr.mxu0 0.0
      %326 = vmatpush1.msra.mxu0 0.0
      %327 = vmatprep.subr.mxu0 0.0
      %328 = vmatpush1.msra.mxu0 0.0
      %329 = vmatprep.subr.mxu0 0.0
      %330 = vmatpush1.msra.mxu0 0.0
      %331 = vmatprep.subr.mxu0 0.0
      %332 = vmatpush1.msra.mxu0 0.0
      %333 = vmatprep.subr.mxu0 0.0
      %334 = vmatpush1.msra.mxu0 0.0
      %335 = vmatprep.subr.mxu0 0.0
      %336 = vmatpush1.msra.mxu0 0.0
      %337 = vmatprep.subr.mxu0 0.0
      %338 = vmatpush1.msra.mxu0 0.0
      %339 = vmatprep.subr.mxu0 0.0
      %340 = vmatpush1.msra.mxu0 0.0
      %341 = vmatprep.subr.mxu0 0.0
      %342 = vmatpush1.msra.mxu0 0.0
      %343 = vmatprep.subr.mxu0 0.0
      %344 = vmatpush1.msra.mxu0 0.0
      %345 = vmatprep.subr.mxu0 0.0
      %346 = vmatpush1.msra.mxu0 0.0
      %347 = vmatprep.subr.mxu0 0.0
      %348 = vmatpush1.msra.mxu0 0.0
      %349 = vmatprep.subr.mxu0 0.0
      %350 = vmatpush1.msra.mxu0 0.0
      %351 = vmatprep.subr.mxu0 0.0
      %352 = vmatpush1.msra.mxu0 0.0
      %353 = vmatprep.subr.mxu0 0.0
      %354 = vmatpush1.msra.mxu0 0.0
      %355 = vmatprep.subr.mxu0 0.0
      %356 = vmatpush1.msra.mxu0 0.0
      %357 = vmatprep.subr.mxu0 0.0
      %358 = vmatpush1.msra.mxu0 0.0
      %359 = vmatprep.subr.mxu0 0.0
      %360 = vmatpush1.msra.mxu0 0.0
      %361 = vmatprep.subr.mxu0 0.0
      %362 = vmatpush1.msra.mxu0 0.0
      %363 = vmatprep.subr.mxu0 0.0
      %364 = vmatpush1.msra.mxu0 0.0
      %365 = vmatprep.subr.mxu0 0.0
      %366 = vmatpush1.msra.mxu0 0.0
      %367 = vmatprep.subr.mxu0 0.0
      %368 = vmatpush1.msra.mxu0 0.0
      %369 = vmatprep.subr.mxu0 0.0
      %370 = vmatpush1.msra.mxu0 0.0
      %371 = vmatprep.mubr.f32.mxu0 0.0
      %372 = vmatmul.mubr.f32.gmra.mrb[0].mxu0 %v301
      %v373 = vpop.f32.mrb[0].mxu0
      %v374 = vadd.f32 0.0, %v373
      %v375 = vpop.f32.mrb[0].mxu0
      %376 = vdwg.mxu0
      %v378 = vrot.slane %v374, 2
      %v380 = vadd.f32 %v374, %v378
      %v381 = vxor.u32 %v380, 2147483648
      %v382 = vmul.f32 %v381, 1.442695
      %v383 = vpow.pop %v382
      %v384 = vadd.f32 %v383, 1.0
      %v385 = vrcp.pop %v384
      %v386 = vmul.f32 1.0, %v385
      %387 = vst.msk [vmem:[#allocation6] sm:$0x3] %vm135, %v386
    $region25: #{tpu_custom_call.1} parent=1 // pred_fallthru
      _
    // Predicated region
    $region26: #{tpu_custom_call.1} parent=1 // pred_check
      _
    $region27: #{tpu_custom_call.1} parent=1 // pred_check_branch
      %389 = sbr.rel (0) target = $region29
    $region28: #{tpu_custom_call.1} parent=1 // pred_region
      %s391 = ssub.s32 32, 32
      %392 = vsyncadd [#allocation5], %s391
      %s394 = sshll.u32 [#allocation6], 4
      %s395 = int_to_ptr.vmem [resolvable:$true] %s394
      %397 = dma.vmem_to_hbm [thread:$0]  %s395, 32, %s3, [#allocation5]
    $region29: #{tpu_custom_call.1} parent=1 // pred_fallthru
      _
    // Predicated region
    $region30: #{tpu_custom_call.1} parent=1 // pred_check
      _
    $region31: #{tpu_custom_call.1} parent=1 // pred_check_branch
      %399 = sbr.rel (0) target = $region33
    $region32: #{tpu_custom_call.1} parent=1 // pred_region
      %400 = dma.done [#allocation5], 32
    $region33: #{tpu_custom_call.1} parent=1 // pred_fallthru
      _
    %401 = vsyncpa [#allocation4], 1
    %402 = vsyncpa [#allocation5], 1

</llo_original>
